<compile_context>
chip_gen: v7x
topology: tpu7x:2x2x1
jax: 0.10.0
libtpu: 0.0.40
codegen_flags: <defaults>
</compile_context>

<pallas_src>
import numpy as np
import jax
import jax.numpy as jnp
from jax.experimental import pallas as pl
from jax.experimental.pallas import tpu as pltpu


def _round_up(n, m):
    return ((n + m - 1) // m) * m


def _cdiv(a, b):
    return -(-a // b)


def _pairwise_kernel(x_ref, lab_ref, w_ref, out_ref):
    # grid = (chunk [parallel], step [arbitrary / reduction over spatial tiles])
    i = pl.program_id(1)

    @pl.when(i == 0)
    def _():
        out_ref[...] = jnp.zeros_like(out_ref)

    x = x_ref[...].astype(jnp.float32)                         # (B, C, Lt)
    # KLDivLoss(reduction='none') zeroes contributions where target <= 0;
    # clamping the target to 0 reproduces that exactly in the form below.
    t = jnp.maximum(lab_ref[...].astype(jnp.float32), 0.0)     # (B, C, Lt)
    w = w_ref[...]                                             # (1, Lt) f32

    # log_softmax denominator over the channel (unpadded) axis.
    m = jnp.max(x, axis=1, keepdims=True)                      # (B, 1, Lt)
    lse = jnp.log(jnp.sum(jnp.exp(x - m), axis=1, keepdims=True)) + m

    # sum_c t*(log t - log_softmax(x)) = sum_c t*(log t - x) + lse * sum_c t
    # t == 0 contributes exactly 0 (0 * finite) thanks to the tiny clamp.
    tlt_minus_tx = t * (jnp.log(jnp.maximum(t, 1e-30)) - x)    # (B, C, Lt)
    s_pix = (jnp.sum(tlt_minus_tx, axis=1, keepdims=True)
             + lse * jnp.sum(t, axis=1, keepdims=True))        # (B, 1, Lt)
    s = jnp.sum(s_pix, axis=0)                                 # (1, Lt)

    # Gate on w > 0 with a SELECT before accumulating: lanes past the true
    # spatial extent (partial last tile / padded chunk tiles) hold unspecified
    # data that may be NaN/Inf, and NaN * 0 would poison the accumulator.
    contrib = jnp.where(w > 0.0, s * w, 0.0)                   # (1, Lt)
    out_ref[...] += contrib.reshape(out_ref.shape)             # (1, 1, Lt)


def _stage_weight(H, W, K, pad, d):
    """Per-pixel multiplicity of the unfold with given dilation (separable)."""
    out_h = H + 2 * pad - d * (K - 1)
    out_w = W + 2 * pad - d * (K - 1)
    if out_h <= 0 or out_w <= 0:
        raise ValueError(
            f"Unfold output size is non-positive (H={H}, W={W}, K={K}, "
            f"pad={pad}, dilation={d}); torch.nn.Unfold would raise here.")
    wr = np.zeros(H, np.float32)
    wc = np.zeros(W, np.float32)
    for ki in range(K):
        lo = max(0, ki * d - pad)
        hi = min(H - 1, out_h - 1 + ki * d - pad)
        if hi >= lo:
            wr[lo:hi + 1] += 1.0
    for kj in range(K):
        lo = max(0, kj * d - pad)
        hi = min(W - 1, out_w - 1 + kj * d - pad)
        if hi >= lo:
            wc[lo:hi + 1] += 1.0
    denom = K * K * out_h * out_w
    return np.outer(wr, wc), denom


def _vmem_plan(B, C, x_itemsize, lab_itemsize, L, max_tile_lanes=None):
    """Per-generation tile size (lanes) and scoped-VMEM limit."""
    try:
        phys = int(pltpu.get_tpu_info().vmem_capacity_bytes)
    except Exception:
        phys = 64 * 1024 * 1024            # conservative fallback: v7x per-TC VMEM
    # ~75% of physical VMEM: 128 MiB -> 96 MiB (v5e/v6e), 64 MiB -> 48 MiB (v7x).
    vmem_limit = min(phys * 3 // 4, 100 * 1024 * 1024)

    # Per spatial-lane VMEM bytes: double-buffered x + label windows,
    # double-buffered w, resident out block, plus headroom for the f32
    # compute intermediates of the current block.
    per_lane = (2 * B * C * (x_itemsize + lab_itemsize)
                + 2 * 4 + 4
                + 6 * B * C * 4)
    budget = int(vmem_limit * 0.6)
    lt = max(128, (budget // per_lane) // 128 * 128)
    lt = min(lt, _round_up(L, 128))
    if max_tile_lanes is not None:
        lt = min(lt, max(128, _round_up(max_tile_lanes, 128)))
    return lt, vmem_limit


def pairwise_potential_high_order(x, label, kernel_size, dilation_rate,
                                  is_dilation=True, *, num_chunks=2,
                                  max_tile_lanes=None):
    """x, label: (B, C, H, W).  bf16 logits are supported (recommended for
    bandwidth); keeping label in f32 preserves the exact target distribution.
    All math runs in f32 inside the kernel."""
    B, C, H, W = x.shape
    assert label.shape == x.shape
    pad = kernel_size // 2
    # NOTE: the PyTorch module computes self.padding1 but never uses it; the
    # dilated unfolds also use padding = kernel_size // 2.  We match that.
    stages = [1] + list(dilation_rate) if is_dilation else [1]
    L = H * W

    # ---- static per-pixel weight map folding every unfold stage (host) ----
    wmap = np.zeros((H, W), np.float32)
    for d in stages:
        wd, denom = _stage_weight(H, W, kernel_size, pad, d)
        wmap += wd / float(B * C * denom)

    # ---- per-generation tiling; NO copies / padding of x or label ----
    lt, vmem_limit = _vmem_plan(B, C, jnp.dtype(x.dtype).itemsize,
                                jnp.dtype(label.dtype).itemsize, L,
                                max_tile_lanes)
    n_valid = _cdiv(L, lt)                          # tiles that cover real data
    n_chunks = max(1, min(int(num_chunks), n_valid))
    n_tiles = _round_up(n_valid, n_chunks)          # pad so every chunk has work
    steps = n_tiles // n_chunks

    # Free reshapes of contiguous arrays (no HBM copies of the big inputs).
    xf = x.reshape(B, C, L)
    lf = label.reshape(B, C, L)

    # Tiny padded weight map; padded lanes are exactly 0 => gated in the kernel.
    wflat = np.zeros((1, n_tiles * lt), np.float32)
    wflat[0, :L] = wmap.reshape(-1)
    wflat = jnp.asarray(wflat)

    def in_map(c, i):
        # Clamp to the last valid tile: padded chunk-tiles re-read valid data
        # (their weight block is all-zero so they contribute nothing), and no
        # DMA ever targets a fully out-of-bounds block.
        return (0, 0, jnp.minimum(c * steps + i, n_valid - 1))

    def w_map(c, i):
        return (0, c * steps + i)

    flops = 10 * B * C * L
    transcendentals = 2 * B * C * L + B * L
    bytes_accessed = (B * C * L * (jnp.dtype(x.dtype).itemsize
                                   + jnp.dtype(label.dtype).itemsize)
                      + n_tiles * lt * 4 + n_chunks * lt * 4)

    out = pl.pallas_call(
        _pairwise_kernel,
        out_shape=jax.ShapeDtypeStruct((n_chunks, 1, lt), jnp.float32),
        grid_spec=pltpu.PrefetchScalarGridSpec(
            num_scalar_prefetch=0,
            grid=(n_chunks, steps),
            in_specs=[
                pl.BlockSpec((B, C, lt), in_map),    # C = full dim (no pad)
                pl.BlockSpec((B, C, lt), in_map),
                pl.BlockSpec((1, lt), w_map),
            ],
            out_specs=pl.BlockSpec((1, 1, lt), lambda c, i: (c, 0, 0)),
        ),
        compiler_params=pltpu.CompilerParams(
            dimension_semantics=("parallel", "arbitrary"),
            vmem_limit_bytes=int(vmem_limit)),
        cost_estimate=pl.CostEstimate(flops=int(flops),
                                      transcendentals=int(transcendentals),
                                      bytes_accessed=int(bytes_accessed)),
    )(xf, lf, wflat)

    # Tiny final cross-lane reduce of the per-chunk partials (outside kernel).
    return jnp.sum(out)


def _ref_loss(x, label, K, dilation_rate, is_dilation=True):
    """Pure-JAX reference: explicit unfold + KLDiv + mean (PyTorch semantics)."""
    B, C, H, W = x.shape
    pad = K // 2
    logx = jax.nn.log_softmax(x, axis=1)

    def stage(d):
        out_h = H + 2 * pad - d * (K - 1)
        out_w = W + 2 * pad - d * (K - 1)
        xp = jnp.pad(logx, ((0, 0), (0, 0), (pad, pad), (pad, pad)))
        lp = jnp.pad(label, ((0, 0), (0, 0), (pad, pad), (pad, pad)))
        total = 0.0
        for ki in range(K):
            for kj in range(K):
                xs = xp[:, :, ki * d:ki * d + out_h, kj * d:kj * d + out_w]
                ls = lp[:, :, ki * d:ki * d + out_h, kj * d:kj * d + out_w]
                kl = jnp.where(ls > 0,
                               ls * (jnp.log(jnp.where(ls > 0, ls, 1.0)) - xs),
                               0.0)
                total = total + jnp.sum(kl)
        return total / (B * C * K * K * out_h * out_w)

    stages = [1] + list(dilation_rate) if is_dilation else [1]
    return sum(stage(d) for d in stages)


if __name__ == "__main__":
    kernel_size = 3
    dilation_rate = [2, 3]
    is_dilation = True

    key = jax.random.PRNGKey(0)
    kx, klab, kx2, klab2 = jax.random.split(key, 4)

    # Primary shape consistent with the module's forward (NCHW logits + label).
    B, C, H, W = 2, 4, 16, 16
    x = jax.random.normal(kx, (B, C, H, W), dtype=jnp.float32)
    label = jax.nn.softmax(
        jax.random.normal(klab, (B, C, H, W), dtype=jnp.float32), axis=1)

    ref = jax.block_until_ready(
        _ref_loss(x, label, kernel_size, dilation_rate, is_dilation))

    # Auto-sized (single-tile here) path.
    loss = jax.block_until_ready(
        pairwise_potential_high_order(x, label, kernel_size, dilation_rate,
                                      is_dilation))
    np.testing.assert_allclose(np.asarray(loss), np.asarray(ref),
                               rtol=1e-4, atol=1e-5)

    # Forced multi-tile / 2-chunk path (exercises the cdiv grid, the resident
    # accumulator, the clamped index_map and the parallel chunk axis).
    loss_tiled = jax.block_until_ready(
        pairwise_potential_high_order(x, label, kernel_size, dilation_rate,
                                      is_dilation, num_chunks=2,
                                      max_tile_lanes=128))
    np.testing.assert_allclose(np.asarray(loss_tiled), np.asarray(ref),
                               rtol=1e-4, atol=1e-5)

    # bf16 logits + f32 label: halves the dominant HBM stream while keeping the
    # target distribution exact; math stays f32 inside the kernel.
    loss_bf16 = jax.block_until_ready(
        pairwise_potential_high_order(x.astype(jnp.bfloat16), label,
                                      kernel_size, dilation_rate, is_dilation,
                                      num_chunks=2, max_tile_lanes=128))
    np.testing.assert_allclose(np.asarray(loss_bf16), np.asarray(ref),
                               rtol=3e-2, atol=3e-2)

    # Odd channel count + non-multiple-of-128 spatial size: exercises the
    # unpadded-C reduction and the partial-last-tile w>0 gating.
    B2, C2, H2, W2 = 2, 5, 12, 20
    x2 = jax.random.normal(kx2, (B2, C2, H2, W2), dtype=jnp.float32)
    label2 = jax.nn.softmax(
        jax.random.normal(klab2, (B2, C2, H2, W2), dtype=jnp.float32), axis=1)
    ref2 = jax.block_until_ready(
        _ref_loss(x2, label2, kernel_size, dilation_rate, is_dilation))
    loss2 = jax.block_until_ready(
        pairwise_potential_high_order(x2, label2, kernel_size, dilation_rate,
                                      is_dilation, num_chunks=2,
                                      max_tile_lanes=128))
    np.testing.assert_allclose(np.asarray(loss2), np.asarray(ref2),
                               rtol=1e-4, atol=1e-5)

    # is_dilation=False path (single unfold stage), matching the module default.
    ref_nd = jax.block_until_ready(
        _ref_loss(x, label, kernel_size, dilation_rate, False))
    loss_nd = jax.block_until_ready(
        pairwise_potential_high_order(x, label, kernel_size, dilation_rate,
                                      False))
    np.testing.assert_allclose(np.asarray(loss_nd), np.asarray(ref_nd),
                               rtol=1e-4, atol=1e-5)

    print("KERNEL_OK")
</pallas_src>

<mosaic_0001>
module attributes {stable_mosaic.version = 11 : i64} {
  func.func @_pairwise_kernel(%arg0: i32, %arg1: i32, %arg2: memref<2x4x256xf32, #tpu.memory_space<vmem>>, %arg3: memref<2x4x256xf32, #tpu.memory_space<vmem>>, %arg4: memref<1x256xf32, #tpu.memory_space<vmem>>, %arg5: memref<1x1x256xf32, #tpu.memory_space<vmem>>) attributes {dimension_semantics = [#tpu.dimension_semantics<parallel>, #tpu.dimension_semantics<arbitrary>], iteration_bounds = array<i64: 1, 1>, scalar_prefetch = 0 : i64, scratch_operands = 0 : i64, tpu.core_type = #tpu.core_type<tc>, window_params = [{transform_indices = @transform_0, window_bounds = array<i64: 2, 4, 256>}, {transform_indices = @transform_1, window_bounds = array<i64: 2, 4, 256>}, {transform_indices = @transform_2, window_bounds = array<i64: 1, 256>}, {transform_indices = @transform_3, window_bounds = array<i64: 1, 1, 256>}]} {
    %c0_i32 = arith.constant 0 : i32
    %0 = arith.cmpi eq, %arg1, %c0_i32 : i32
    %1 = arith.extui %0 : i1 to i32
    %c0_i32_0 = arith.constant 0 : i32
    %2 = arith.cmpi ne, %1, %c0_i32_0 : i32
    scf.if %2 {
      %cst_22 = arith.constant 0.000000e+00 : f32
      %38 = vector.broadcast %cst_22 : f32 to vector<1x1x256xf32>
      %c0_23 = arith.constant 0 : index
      %c0_24 = arith.constant 0 : index
      %c0_25 = arith.constant 0 : index
      %39 = vector.load %arg5[%c0_23, %c0_24, %c0_25] : memref<1x1x256xf32, #tpu.memory_space<vmem>>, vector<1x1x256xf32>
      tpu.vector_store %arg5[%c0_23, %c0_24, %c0_25], %38 {strides = array<i32>} : memref<1x1x256xf32, #tpu.memory_space<vmem>>, vector<1x1x256xf32>,
    } else {
    }
    %c0 = arith.constant 0 : index
    %c0_1 = arith.constant 0 : index
    %c0_2 = arith.constant 0 : index
    %3 = vector.load %arg2[%c0, %c0_1, %c0_2] : memref<2x4x256xf32, #tpu.memory_space<vmem>>, vector<2x4x256xf32>
    %c0_3 = arith.constant 0 : index
    %c0_4 = arith.constant 0 : index
    %c0_5 = arith.constant 0 : index
    %4 = vector.load %arg3[%c0_3, %c0_4, %c0_5] : memref<2x4x256xf32, #tpu.memory_space<vmem>>, vector<2x4x256xf32>
    %cst = arith.constant 0.000000e+00 : f32
    %5 = vector.broadcast %cst : f32 to vector<2x4x256xf32>
    %6 = arith.maximumf %4, %5 : vector<2x4x256xf32>
    %c0_6 = arith.constant 0 : index
    %c0_7 = arith.constant 0 : index
    %7 = vector.load %arg4[%c0_6, %c0_7] : memref<1x256xf32, #tpu.memory_space<vmem>>, vector<1x256xf32>
    %cst_8 = arith.constant dense<0xFF800000> : vector<2x256xf32>
    %8 = vector.multi_reduction <maximumf>, %3, %cst_8 [1] : vector<2x4x256xf32> to vector<2x256xf32>
    %9 = vector.shape_cast %8 : vector<2x256xf32> to vector<2x1x256xf32>
    %10 = vector.broadcast %9 : vector<2x1x256xf32> to vector<2x4x256xf32>
    %11 = arith.subf %3, %10 : vector<2x4x256xf32>
    %12 = math.exp %11 : vector<2x4x256xf32>
    %cst_9 = arith.constant dense<0.000000e+00> : vector<2x256xf32>
    %13 = vector.multi_reduction <add>, %12, %cst_9 [1] : vector<2x4x256xf32> to vector<2x256xf32>
    %14 = vector.shape_cast %13 : vector<2x256xf32> to vector<2x1x256xf32>
    %15 = math.log %14 : vector<2x1x256xf32>
    %16 = arith.addf %15, %9 : vector<2x1x256xf32>
    %cst_10 = arith.constant 1.000000e-30 : f32
    %17 = vector.broadcast %cst_10 : f32 to vector<2x4x256xf32>
    %18 = arith.maximumf %6, %17 : vector<2x4x256xf32>
    %19 = math.log %18 : vector<2x4x256xf32>
    %20 = arith.subf %19, %3 : vector<2x4x256xf32>
    %21 = arith.mulf %6, %20 : vector<2x4x256xf32>
    %cst_11 = arith.constant dense<0.000000e+00> : vector<2x256xf32>
    %22 = vector.multi_reduction <add>, %21, %cst_11 [1] : vector<2x4x256xf32> to vector<2x256xf32>
    %23 = vector.shape_cast %22 : vector<2x256xf32> to vector<2x1x256xf32>
    %cst_12 = arith.constant dense<0.000000e+00> : vector<2x256xf32>
    %24 = vector.multi_reduction <add>, %6, %cst_12 [1] : vector<2x4x256xf32> to vector<2x256xf32>
    %25 = vector.shape_cast %24 : vector<2x256xf32> to vector<2x1x256xf32>
    %26 = arith.mulf %16, %25 : vector<2x1x256xf32>
    %27 = arith.addf %23, %26 : vector<2x1x256xf32>
    %cst_13 = arith.constant dense<0.000000e+00> : vector<1x256xf32>
    %28 = vector.multi_reduction <add>, %27, %cst_13 [0] : vector<2x1x256xf32> to vector<1x256xf32>
    %cst_14 = arith.constant 0.000000e+00 : f32
    %29 = vector.broadcast %cst_14 : f32 to vector<1x256xf32>
    %30 = arith.cmpf ogt, %7, %29 : vector<1x256xf32>
    %31 = arith.mulf %28, %7 : vector<1x256xf32>
    %cst_15 = arith.constant 0.000000e+00 : f32
    %32 = vector.broadcast %cst_15 : f32 to vector<1x256xf32>
    %33 = arith.select %30, %31, %32 : vector<1x256xi1>, vector<1x256xf32>
    %c0_16 = arith.constant 0 : index
    %c0_17 = arith.constant 0 : index
    %c0_18 = arith.constant 0 : index
    %34 = vector.load %arg5[%c0_16, %c0_17, %c0_18] : memref<1x1x256xf32, #tpu.memory_space<vmem>>, vector<1x1x256xf32>
    %35 = vector.shape_cast %33 : vector<1x256xf32> to vector<1x1x256xf32>
    %36 = arith.addf %34, %35 : vector<1x1x256xf32>
    %c0_19 = arith.constant 0 : index
    %c0_20 = arith.constant 0 : index
    %c0_21 = arith.constant 0 : index
    %37 = vector.load %arg5[%c0_19, %c0_20, %c0_21] : memref<1x1x256xf32, #tpu.memory_space<vmem>>, vector<1x1x256xf32>
    tpu.vector_store %arg5[%c0_19, %c0_20, %c0_21], %36 {strides = array<i32>} : memref<1x1x256xf32, #tpu.memory_space<vmem>>, vector<1x1x256xf32>,
    return
  }
  func.func @transform_0(%arg0: i32, %arg1: i32) -> (i32, i32, i32) {
    %c1_i32 = arith.constant 1 : i32
    %0 = arith.muli %arg0, %c1_i32 : i32
    %1 = arith.addi %0, %arg1 : i32
    %c0_i32 = arith.constant 0 : i32
    %2 = arith.minsi %1, %c0_i32 : i32
    %c0_i32_0 = arith.constant 0 : i32
    %c0_i32_1 = arith.constant 0 : i32
    %c0_i32_2 = arith.constant 0 : i32
    return %c0_i32_0, %c0_i32_1, %2 : i32, i32, i32
  }
  func.func @transform_1(%arg0: i32, %arg1: i32) -> (i32, i32, i32) {
    %c1_i32 = arith.constant 1 : i32
    %0 = arith.muli %arg0, %c1_i32 : i32
    %1 = arith.addi %0, %arg1 : i32
    %c0_i32 = arith.constant 0 : i32
    %2 = arith.minsi %1, %c0_i32 : i32
    %c0_i32_0 = arith.constant 0 : i32
    %c0_i32_1 = arith.constant 0 : i32
    %c0_i32_2 = arith.constant 0 : i32
    return %c0_i32_0, %c0_i32_1, %2 : i32, i32, i32
  }
  func.func @transform_2(%arg0: i32, %arg1: i32) -> (i32, i32) {
    %c1_i32 = arith.constant 1 : i32
    %0 = arith.muli %arg0, %c1_i32 : i32
    %1 = arith.addi %0, %arg1 : i32
    %c0_i32 = arith.constant 0 : i32
    %c0_i32_0 = arith.constant 0 : i32
    return %c0_i32, %1 : i32, i32
  }
  func.func @transform_3(%arg0: i32, %arg1: i32) -> (i32, i32, i32) {
    %c0_i32 = arith.constant 0 : i32
    %c0_i32_0 = arith.constant 0 : i32
    %c0_i32_1 = arith.constant 0 : i32
    return %arg0, %c0_i32, %c0_i32_0 : i32, i32, i32
  }
}

</mosaic_0001>

<llo_original>
// kernel: tpu_custom_call.1
$region0: #{tpu_custom_call.1}
  #allocation0 [shape = 'u32[]', space=smem, size = 0x4, offset = 0x4, fixed_abs, tag = 'smem constant byte address 0x4 - core index']
  #allocation1 [shape = 'u32[144,128]{1,0:T(1,128)}', space=vmem, size = 0x12000, scoped, tag = 'internal scratch']
  %s0 = inlined_call_operand.hbm [shape: f32[2,4,256], index: 0, kind: input, shape index: {}]
  %s1 = inlined_call_operand.hbm [shape: f32[2,4,256], index: 1, kind: input, shape index: {}]
  %s2 = inlined_call_operand.vmem [shape: f32[1,256], index: 2, kind: input, shape index: {}]
  %s3 = inlined_call_operand.hbm [shape: f32[1,1,256], index: 3, kind: output, shape index: {}]
  %s4 = sld [smem:[#allocation0]]
  $region34: #{tpu_custom_call.1} parent=0
    _
  %s6 = ssub.s32 1, %s4
  %s7 = scalar_select 0, %s6, %s4
  $region1: #{tpu_custom_call.1} parent=0
    #allocation2 [shape = 'u8[8192]{0}', space=vmem, size = 0x2000, scoped, tag = 'input window, operand 0, single buffered']
    #allocation3 [shape = 's32[1]{0}', space=sflag, size = 0x4, scoped, tag = 'scoped memory for tpu_custom_call.1']
    #allocation4 [shape = 's32[1]{0}', space=sflag, size = 0x4, scoped, tag = 'scoped memory for tpu_custom_call.1']
    #allocation5 [shape = 'u8[8192]{0}', space=vmem, size = 0x2000, scoped, tag = 'input window, operand 1, single buffered']
    #allocation6 [shape = 's32[1]{0}', space=sflag, size = 0x4, scoped, tag = 'scoped memory for tpu_custom_call.1']
    #allocation7 [shape = 'u8[1024]{0}', space=vmem, size = 0x400, scoped, tag = 'output window, operand 0, single buffered']
    %8 = vsyncpa [#allocation3], 0
    %9 = vsyncpa [#allocation6], 0
    %10 = vsyncpa [#allocation4], 0
    // Predicated region
    $region2: #{tpu_custom_call.1} parent=1 // pred_check
      _
    $region3: #{tpu_custom_call.1} parent=1 // pred_check_branch
      %12 = sbr.rel (0) target = $region5
    $region4: #{tpu_custom_call.1} parent=1 // pred_region
      %s13 = sadd.s32 0, 0
      %p14 = scmp.lt.s32.totalorder %s13, 0
      %s15 = scalar_select %p14, %s13, 0
      %s16 = smul.u32 2, %s15
      %s18 = ssub.s32 256, 256
      %19 = vsyncadd [#allocation3], %s18
      %s20 = smul.addr %s16, 64
      %s21 = scalar_lea.hbm %s0, %s20
      %s22 = sshll.u32 [#allocation2], 4
      %s23 = int_to_ptr.vmem [resolvable:$true] %s22
      %28 = dma.hbm_to_vmem [thread:$0]  %s21, 256, %s23, [#allocation3], 128, 128, 8
    $region5: #{tpu_custom_call.1} parent=1 // pred_fallthru
      _
    // Predicated region
    $region6: #{tpu_custom_call.1} parent=1 // pred_check
      _
    $region7: #{tpu_custom_call.1} parent=1 // pred_check_branch
      %30 = sbr.rel (0) target = $region9
    $region8: #{tpu_custom_call.1} parent=1 // pred_region
      %s31 = sadd.s32 0, 0
      %p32 = scmp.lt.s32.totalorder %s31, 0
      %s33 = scalar_select %p32, %s31, 0
      %s34 = smul.u32 2, %s33
      %s36 = ssub.s32 256, 256
      %37 = vsyncadd [#allocation6], %s36
      %s38 = smul.addr %s34, 64
      %s39 = scalar_lea.hbm %s1, %s38
      %s40 = sshll.u32 [#allocation5], 4
      %s41 = int_to_ptr.vmem [resolvable:$true] %s40
      %46 = dma.hbm_to_vmem [thread:$0]  %s39, 256, %s41, [#allocation6], 128, 128, 8
    $region9: #{tpu_custom_call.1} parent=1 // pred_fallthru
      _
    // Predicated region
    $region10: #{tpu_custom_call.1} parent=1 // pred_check
      _
    $region11: #{tpu_custom_call.1} parent=1 // pred_check_branch
      %48 = sbr.rel (0) target = $region13
    $region12: #{tpu_custom_call.1} parent=1 // pred_region
      %s49 = sadd.s32 0, 0
      %s50 = smul.u32 2, %s49
      %p51 = scmp.lt.s32.totalorder %s50, 1
      %s52 = scalar_select %p51, %s50, 1
      %s53 = scalar_lea.vmem %s2, %s52
      %s54 = sadd.s32 0, 0
      %s55 = smul.u32 2, %s54
    $region13: #{tpu_custom_call.1} parent=1 // pred_fallthru
      _
    // Predicated region
    $region14: #{tpu_custom_call.1} parent=1 // pred_check
      _
    $region15: #{tpu_custom_call.1} parent=1 // pred_check_branch
      %57 = sbr.rel (0) target = $region17
    $region16: #{tpu_custom_call.1} parent=1 // pred_region
      %58 = dma.done [#allocation3], 256
    $region17: #{tpu_custom_call.1} parent=1 // pred_fallthru
      _
    // Predicated region
    $region18: #{tpu_custom_call.1} parent=1 // pred_check
      _
    $region19: #{tpu_custom_call.1} parent=1 // pred_check_branch
      %60 = sbr.rel (0) target = $region21
    $region20: #{tpu_custom_call.1} parent=1 // pred_region
      %61 = dma.done [#allocation6], 256
    $region21: #{tpu_custom_call.1} parent=1 // pred_fallthru
      _
    %s62 = sadd.s32 0, 0
    %s63 = smul.u32 2, %s62
    %p64 = scmp.lt.s32.totalorder %s63, 1
    %s65 = scalar_select %p64, %s63, 1
    %s66 = scalar_lea.vmem %s2, %s65
    %s67 = sadd.s32 0, 0
    %p68 = scmp.lt.s32.totalorder %s67, 0
    %s69 = scalar_select %p68, %s67, 0
    %s70 = smul.u32 2, %s69
    %s71 = sadd.s32 0, 0
    %p72 = scmp.lt.s32.totalorder %s71, 0
    %s73 = scalar_select %p72, %s71, 0
    %s74 = smul.u32 2, %s73
    %s75 = sadd.s32 0, 0
    %s76 = smul.u32 2, %s75
    %p77 = scmp.lt.s32.totalorder %s76, 1
    %s78 = scalar_select %p77, %s76, 1
    %s79 = scalar_lea.vmem %s2, %s78
    %s80 = sadd.s32 0, 0
    %s81 = smul.u32 2, %s80
    %p82 = scmp.eq.s32.totalorder 0, 0
    // Predicated region
    $region22: #{tpu_custom_call.1} parent=1 // pred_check
      %p83 = pneg %p82
    $region23: #{tpu_custom_call.1} parent=1 // pred_check_branch
      %85 = sbr.rel (%p83) target = $region25
    $region24: #{tpu_custom_call.1} parent=1 // pred_region
      %v86 = vlaneseq
      %vm87 = vcmp.ge.s32.totalorder %v86, 0
      %vm88 = vcmp.lt.s32.totalorder %v86, 256
      %vm89 = vmand %vm87, %vm88
      %90 = vst.msk [vmem:[#allocation7] sm:$0x3] %vm89, 0.0
    $region25: #{tpu_custom_call.1} parent=1 // pred_fallthru
      _
    %v91 = vld [vmem:[#allocation2] sm:$0xff]
    %v92 = vld [vmem:[#allocation2 + $0x8] sm:$0xff]
    %v93 = vld [vmem:[#allocation5] sm:$0xff]
    %v94 = vld [vmem:[#allocation5 + $0x8] sm:$0xff]
    %v95 = vmax.f32 %v93, 0.0
    %v96 = vmax.f32 %v94, 0.0
    %v97 = vld [vmem:[%s79] sm:$0x3]
    %v100 = vcombine.high %v91, %v91
    %v101 = vcombine.high %v92, %v92
    %vm104 = vcmask 1043456
    %v105 = vsel %vm104, %v91, -inf
    %v106 = vrot.slane %v105, 4
    %v107 = vmax.f32 %v105, %v106
    %v108 = vrot.slane %v107, 2
    %v109 = vmax.f32 %v107, %v108
    %v110 = vrot.slane %v109, 1
    %v111 = vmax.f32 %v109, %v110
    %v112 = vsel %vm104, %v100, -inf
    %v113 = vrot.slane %v112, 4
    %v114 = vmax.f32 %v112, %v113
    %v115 = vrot.slane %v114, 2
    %v116 = vmax.f32 %v114, %v115
    %v117 = vrot.slane %v116, 1
    %v118 = vmax.f32 %v116, %v117
    %v119 = vsel %vm104, %v92, -inf
    %v120 = vrot.slane %v119, 4
    %v121 = vmax.f32 %v119, %v120
    %v122 = vrot.slane %v121, 2
    %v123 = vmax.f32 %v121, %v122
    %v124 = vrot.slane %v123, 1
    %v125 = vmax.f32 %v123, %v124
    %v126 = vsel %vm104, %v101, -inf
    %v127 = vrot.slane %v126, 4
    %v128 = vmax.f32 %v126, %v127
    %v129 = vrot.slane %v128, 2
    %v130 = vmax.f32 %v128, %v129
    %v131 = vrot.slane %v130, 1
    %v132 = vmax.f32 %v130, %v131
    %v137 = vcombine.low %v111, %v118
    %v138 = vcombine.low %v125, %v132
    %v141 = vsub.f32 %v91, %v137
    %v142 = vsub.f32 %v92, %v138
    %v143 = vmul.f32 %v141, 1.442695
    %v144 = vpow.pop %v143
    %v145 = vmul.f32 %v142, 1.442695
    %v146 = vpow.pop %v145
    %v149 = vcombine.high %v144, %v144
    %v150 = vcombine.high %v146, %v146
    %v153 = vsel %vm104, %v144, 0.0
    %v154 = vrot.slane %v153, 4
    %v155 = vadd.f32 %v153, %v154
    %v156 = vrot.slane %v155, 2
    %v157 = vadd.f32 %v155, %v156
    %v158 = vrot.slane %v157, 1
    %v159 = vadd.f32 %v157, %v158
    %v160 = vsel %vm104, %v149, 0.0
    %v161 = vrot.slane %v160, 4
    %v162 = vadd.f32 %v160, %v161
    %v163 = vrot.slane %v162, 2
    %v164 = vadd.f32 %v162, %v163
    %v165 = vrot.slane %v164, 1
    %v166 = vadd.f32 %v164, %v165
    %v167 = vsel %vm104, %v146, 0.0
    %v168 = vrot.slane %v167, 4
    %v169 = vadd.f32 %v167, %v168
    %v170 = vrot.slane %v169, 2
    %v171 = vadd.f32 %v169, %v170
    %v172 = vrot.slane %v171, 1
    %v173 = vadd.f32 %v171, %v172
    %v174 = vsel %vm104, %v150, 0.0
    %v175 = vrot.slane %v174, 4
    %v176 = vadd.f32 %v174, %v175
    %v177 = vrot.slane %v176, 2
    %v178 = vadd.f32 %v176, %v177
    %v179 = vrot.slane %v178, 1
    %v180 = vadd.f32 %v178, %v179
    %v181 = vlog2.pop %v159
    %v182 = vmul.f32 %v181, 0.6931472
    %v183 = vlog2.pop %v166
    %v184 = vmul.f32 %v183, 0.6931472
    %v185 = vlog2.pop %v173
    %v186 = vmul.f32 %v185, 0.6931472
    %v187 = vlog2.pop %v180
    %v188 = vmul.f32 %v187, 0.6931472
    %v189 = vadd.f32 %v182, %v111
    %v190 = vadd.f32 %v184, %v118
    %v191 = vadd.f32 %v186, %v125
    %v192 = vadd.f32 %v188, %v132
    %v193 = vmax.f32 %v95, 1e-30
    %v194 = vmax.f32 %v96, 1e-30
    %v195 = vlog2.pop %v193
    %v196 = vmul.f32 %v195, 0.6931472
    %v197 = vlog2.pop %v194
    %v198 = vmul.f32 %v197, 0.6931472
    %v199 = vsub.f32 %v196, %v91
    %v200 = vsub.f32 %v198, %v92
    %v201 = vmul.f32 %v95, %v199
    %v202 = vmul.f32 %v96, %v200
    %v205 = vcombine.high %v201, %v201
    %v206 = vcombine.high %v202, %v202
    %v209 = vsel %vm104, %v201, 0.0
    %v210 = vrot.slane %v209, 4
    %v211 = vadd.f32 %v209, %v210
    %v212 = vrot.slane %v211, 2
    %v213 = vadd.f32 %v211, %v212
    %v214 = vrot.slane %v213, 1
    %v215 = vadd.f32 %v213, %v214
    %v216 = vsel %vm104, %v205, 0.0
    %v217 = vrot.slane %v216, 4
    %v218 = vadd.f32 %v216, %v217
    %v219 = vrot.slane %v218, 2
    %v220 = vadd.f32 %v218, %v219
    %v221 = vrot.slane %v220, 1
    %v222 = vadd.f32 %v220, %v221
    %v223 = vsel %vm104, %v202, 0.0
    %v224 = vrot.slane %v223, 4
    %v225 = vadd.f32 %v223, %v224
    %v226 = vrot.slane %v225, 2
    %v227 = vadd.f32 %v225, %v226
    %v228 = vrot.slane %v227, 1
    %v229 = vadd.f32 %v227, %v228
    %v230 = vsel %vm104, %v206, 0.0
    %v231 = vrot.slane %v230, 4
    %v232 = vadd.f32 %v230, %v231
    %v233 = vrot.slane %v232, 2
    %v234 = vadd.f32 %v232, %v233
    %v235 = vrot.slane %v234, 1
    %v236 = vadd.f32 %v234, %v235
    %v239 = vcombine.high %v95, %v95
    %v240 = vcombine.high %v96, %v96
    %v243 = vsel %vm104, %v95, 0.0
    %v244 = vrot.slane %v243, 4
    %v245 = vadd.f32 %v243, %v244
    %v246 = vrot.slane %v245, 2
    %v247 = vadd.f32 %v245, %v246
    %v248 = vrot.slane %v247, 1
    %v249 = vadd.f32 %v247, %v248
    %v250 = vsel %vm104, %v239, 0.0
    %v251 = vrot.slane %v250, 4
    %v252 = vadd.f32 %v250, %v251
    %v253 = vrot.slane %v252, 2
    %v254 = vadd.f32 %v252, %v253
    %v255 = vrot.slane %v254, 1
    %v256 = vadd.f32 %v254, %v255
    %v257 = vsel %vm104, %v96, 0.0
    %v258 = vrot.slane %v257, 4
    %v259 = vadd.f32 %v257, %v258
    %v260 = vrot.slane %v259, 2
    %v261 = vadd.f32 %v259, %v260
    %v262 = vrot.slane %v261, 1
    %v263 = vadd.f32 %v261, %v262
    %v264 = vsel %vm104, %v240, 0.0
    %v265 = vrot.slane %v264, 4
    %v266 = vadd.f32 %v264, %v265
    %v267 = vrot.slane %v266, 2
    %v268 = vadd.f32 %v266, %v267
    %v269 = vrot.slane %v268, 1
    %v270 = vadd.f32 %v268, %v269
    %v271 = vmul.f32 %v189, %v249
    %v272 = vmul.f32 %v190, %v256
    %v273 = vmul.f32 %v191, %v263
    %v274 = vmul.f32 %v192, %v270
    %v275 = vadd.f32 %v215, %v271
    %v276 = vadd.f32 %v222, %v272
    %v277 = vadd.f32 %v229, %v273
    %v278 = vadd.f32 %v236, %v274
    %v279 = vadd.f32 %v275, %v277
    %v280 = vadd.f32 %v276, %v278
    %vm281 = vcmp.gt.f32.partialorder %v97, 0.0
    %v283 = vlaneseq
    %v284 = vshrl.u32 %v283, 7
    %v285 = vsub.s32 0, %v284
    %v286 = vrot.slane %v97, %v285
    %v287 = vlaneseq
    %v288 = vshrl.u32 %v287, 7
    %v289 = vsub.s32 1, %v288
    %v290 = vrot.slane %v97, %v289
    %v293 = vmul.f32 %v279, %v286
    %v294 = vmul.f32 %v280, %v290
    %v297 = vcombine.low %v293, %v294
    %v299 = vunpack.c.l.s4 1966171168
    %v300 = vunpack.c.0.s8 %v299
    %v301 = vlaneseq
    %v302 = vshrl.u32 %v301, 7
    %v303 = vsub.s32 %v300, %v302
    %v304 = vrot.slane %v297, %v303
    %v306 = vunpack.c.l.s4 1966171168
    %v307 = vunpack.c.0.s8 %v306
    %v308 = vlaneseq
    %v309 = vshrl.u32 %v308, 7
    %v310 = vsub.s32 %v307, %v309
    %v311 = vrot.slane %v304, %v310
    %v313 = vsel %vm281, %v311, 0.0
    %v314 = vld [vmem:[#allocation7] sm:$0x3]
    %v315 = vadd.f32 %v314, %v313
    %v316 = vlaneseq
    %vm317 = vcmp.ge.s32.totalorder %v316, 0
    %vm318 = vcmp.lt.s32.totalorder %v316, 256
    %vm319 = vmand %vm317, %vm318
    %320 = vst.msk [vmem:[#allocation7] sm:$0x3] %vm319, %v315
    // Predicated region
    $region26: #{tpu_custom_call.1} parent=1 // pred_check
      _
    $region27: #{tpu_custom_call.1} parent=1 // pred_check_branch
      %322 = sbr.rel (0) target = $region29
    $region28: #{tpu_custom_call.1} parent=1 // pred_region
      %s324 = ssub.s32 32, 32
      %325 = vsyncadd [#allocation4], %s324
      %s327 = sshll.u32 [#allocation7], 4
      %s328 = int_to_ptr.vmem [resolvable:$true] %s327
      %330 = dma.vmem_to_hbm [thread:$0]  %s328, 32, %s3, [#allocation4]
    $region29: #{tpu_custom_call.1} parent=1 // pred_fallthru
      _
    // Predicated region
    $region30: #{tpu_custom_call.1} parent=1 // pred_check
      _
    $region31: #{tpu_custom_call.1} parent=1 // pred_check_branch
      %332 = sbr.rel (0) target = $region33
    $region32: #{tpu_custom_call.1} parent=1 // pred_region
      %333 = dma.done [#allocation4], 32
    $region33: #{tpu_custom_call.1} parent=1 // pred_fallthru
      _
    %334 = vsyncpa [#allocation3], 1
    %335 = vsyncpa [#allocation6], 1
    %336 = vsyncpa [#allocation4], 1

</llo_original>
